<compile_context>
chip_gen: v6e
topology: v6e:2x2x1
jax: 0.10.0
libtpu: 0.0.40
codegen_flags: <defaults>
</compile_context>

<pallas_src>
import functools
import math
from collections import OrderedDict

import jax
import jax.numpy as jnp
from jax.experimental import pallas as pl
from jax.experimental.pallas import tpu as pltpu


def _round_up(x, m):
    return ((x + m - 1) // m) * m


def _ceil_div(a, b):
    return -(-a // b)


# -----------------------------------------------------------------------------
# Pallas kernel: one grid step = one (head, out-tile) of the fused hypernetwork.
# -----------------------------------------------------------------------------
def _hyper_heads_kernel(num_hidden_linears, head_ids_ref, tile_ids_ref, *refs):
    """refs = (z, [W_l, V_l] * L, W_out_tile, b_out_tile, out, h_scratch).

      z          : (B_pad, in_features) f32   shared by every head
      W_l        : (d_in_l, hidden)     bf16  head's layer-l weight, pre-transposed
      V_l        : (3, hidden)          f32   rows = (bias, ln_gamma, ln_beta)
      W_out_tile : (hidden, tile_n)     bf16  pre-transposed, zero-padded, ragged-packed
      b_out_tile : (1, tile_n)          f32   zero-padded
      out        : (B_pad, tile_n)      f32
      h_scratch  : (B_pad, hidden)      f32   cached hidden activation (per head)
    """
    n_hidden_refs = 2 * num_hidden_linears
    z_ref = refs[0]
    w_out_ref = refs[1 + n_hidden_refs]
    b_out_ref = refs[2 + n_hidden_refs]
    out_ref = refs[3 + n_hidden_refs]
    h_ref = refs[4 + n_hidden_refs]

    s = pl.program_id(0)

    # Recompute the hidden stack only on the first tile of each head; all
    # subsequent tiles of the same head reuse the cached activation.
    @pl.when(tile_ids_ref[s] == 0)
    def _compute_hidden():
        h = z_ref[...].astype(jnp.float32)
        for l in range(num_hidden_linears):
            w = refs[1 + 2 * l][...]          # (d_in, hidden)  bf16
            v = refs[2 + 2 * l][...]          # (3, hidden)     f32

            # Linear (MXU, bf16 x bf16 -> f32 acc): y = h @ W + b
            h = jnp.dot(h.astype(w.dtype), w,
                        preferred_element_type=jnp.float32) + v[0:1, :]

            # LayerNorm (single-pass: E[x^2] - E[x]^2, eps=1e-5, affine).
            mu = jnp.mean(h, axis=-1, keepdims=True)
            ms = jnp.mean(h * h, axis=-1, keepdims=True)
            var = jnp.maximum(ms - mu * mu, 0.0)
            h = (h - mu) * jax.lax.rsqrt(var + 1e-5)
            h = h * v[1:2, :] + v[2:3, :]

            # ReLU
            h = jnp.maximum(h, 0.0)
        h_ref[...] = h

    # Final projection for this out-tile (GEMV-like, HBM-bound on w_out).
    h = h_ref[...]
    out_ref[...] = (jnp.dot(h.astype(w_out_ref.dtype), w_out_ref[...],
                            preferred_element_type=jnp.float32)
                    + b_out_ref[...]).astype(out_ref.dtype)


# -----------------------------------------------------------------------------
# Fused forward over all heads: one pallas_call, ragged 1-D grid over tiles.
# -----------------------------------------------------------------------------
@functools.partial(jax.jit, static_argnums=(0, 1))
def _hyper_forward(num_hidden_linears, tile_n, head_ids, tile_ids, z_pad,
                   w_hidden, v_hidden, w_out, b_out):
    total_tiles, hidden, _ = w_out.shape
    b_pad, in_features = z_pad.shape
    num_heads = w_hidden[0].shape[0]

    inputs = [z_pad]
    in_specs = [pl.BlockSpec((b_pad, in_features), lambda s, hid, tid: (0, 0))]
    for l in range(num_hidden_linears):
        d_in = w_hidden[l].shape[1]
        inputs.append(w_hidden[l])            # (H, d_in, hidden) bf16
        in_specs.append(pl.BlockSpec((None, d_in, hidden),
                                     lambda s, hid, tid: (hid[s], 0, 0)))
        inputs.append(v_hidden[l])            # (H, 3, hidden) f32
        in_specs.append(pl.BlockSpec((None, 3, hidden),
                                     lambda s, hid, tid: (hid[s], 0, 0)))
    inputs.append(w_out)                      # (total_tiles, hidden, tile_n) bf16
    in_specs.append(pl.BlockSpec((None, hidden, tile_n),
                                 lambda s, hid, tid: (s, 0, 0)))
    inputs.append(b_out)                      # (total_tiles, 1, tile_n) f32
    in_specs.append(pl.BlockSpec((None, 1, tile_n),
                                 lambda s, hid, tid: (s, 0, 0)))

    out_spec = pl.BlockSpec((None, b_pad, tile_n), lambda s, hid, tid: (s, 0, 0))

    # Advisory cost estimate for XLA's scheduler.
    sum_d_in = sum(int(w_hidden[l].shape[1]) for l in range(num_hidden_linears))
    flops = (2 * b_pad * hidden * sum_d_in * num_heads
             + 2 * b_pad * hidden * tile_n * total_tiles)
    transcendentals = num_heads * num_hidden_linears * b_pad
    bytes_accessed = (z_pad.size * 4
                      + sum(int(w.size) * w.dtype.itemsize for w in w_hidden)
                      + sum(int(v.size) * 4 for v in v_hidden)
                      + int(w_out.size) * w_out.dtype.itemsize
                      + int(b_out.size) * 4
                      + total_tiles * b_pad * tile_n * 4)

    # Explicit VMEM limit (double-buffered operands + h scratch, with headroom);
    # capped below v7x's 64 MiB physical VMEM per TensorCore.
    vmem_need = (2 * z_pad.size * 4
                 + sum(2 * int(w_hidden[l].shape[1]) * hidden * 2
                       + 2 * 3 * hidden * 4
                       for l in range(num_hidden_linears))
                 + 2 * hidden * tile_n * 2
                 + 2 * tile_n * 4
                 + 2 * b_pad * tile_n * 4
                 + b_pad * hidden * 4)
    vmem_limit = int(min(max(2 * vmem_need + (4 << 20), 16 << 20), 48 << 20))

    kernel = functools.partial(_hyper_heads_kernel, num_hidden_linears)

    grid_spec = pltpu.PrefetchScalarGridSpec(
        num_scalar_prefetch=2,
        grid=(total_tiles,),
        in_specs=in_specs,
        out_specs=out_spec,
        scratch_shapes=[pltpu.VMEM((b_pad, hidden), jnp.float32)])

    return pl.pallas_call(
        kernel,
        out_shape=jax.ShapeDtypeStruct((total_tiles, b_pad, tile_n), jnp.float32),
        grid_spec=grid_spec,
        compiler_params=pltpu.CompilerParams(
            # The grid axis carries the cached hidden activation across the
            # tiles of a head -> must execute in order ("arbitrary").
            dimension_semantics=("arbitrary",),
            vmem_limit_bytes=vmem_limit),
        cost_estimate=pl.CostEstimate(flops=flops,
                                      transcendentals=transcendentals,
                                      bytes_accessed=bytes_accessed),
    )(head_ids, tile_ids, *inputs)


# -----------------------------------------------------------------------------
# JAX/Pallas port of HyperNetwork (init mirrors the PyTorch module).
# -----------------------------------------------------------------------------
class HyperNetworkPallas:
    def __init__(self, hyper_in_features, hyper_hidden_layers,
                 hyper_hidden_features, hypo_param_shapes, key,
                 max_tile_n=4096, vmem_operand_budget=20 << 20):
        self.names = list(hypo_param_shapes.keys())
        self.param_shapes = [tuple(hypo_param_shapes[n]) for n in self.names]
        self.out_features = [int(math.prod(s)) for s in self.param_shapes]
        self.num_heads = len(self.names)
        self.hidden = hyper_hidden_features
        self.num_hidden_linears = hyper_hidden_layers + 1

        dims = [hyper_in_features] + [hyper_hidden_features] * self.num_hidden_linears

        # ---- derive a lane-dense tile width under a conservative VMEM budget
        # (fits v5e's 16 MiB scoped default and v7x's 32 MiB scoped / 64 MiB
        #  physical; v6e has ample headroom).
        max_out = max(self.out_features)
        b_pad_nom = 8
        fixed = 2 * b_pad_nom * hyper_in_features * 4               # z (x2 buffers)
        for l in range(self.num_hidden_linears):
            fixed += 2 * dims[l] * self.hidden * 2                  # bf16 hidden weight
            fixed += 2 * 3 * self.hidden * 4                        # f32 bias/gamma/beta
        fixed += b_pad_nom * self.hidden * 4                        # h scratch
        per_col = 2 * self.hidden * 2 + 2 * 4 + 2 * b_pad_nom * 4   # w_out + b_out + out
        avail = max(vmem_operand_budget - fixed, per_col * 128)
        budget_tile = max(128, (avail // per_col) // 128 * 128)
        self.tile_n = int(min(_round_up(max_out, 128), budget_tile, max_tile_n))

        # ---- ragged tiling bookkeeping: head_id / tile_id per grid step.
        self.n_tiles = [max(1, _ceil_div(of, self.tile_n)) for of in self.out_features]
        self.tile_start = []
        head_ids, tile_ids = [], []
        start = 0
        for h_idx, nt in enumerate(self.n_tiles):
            self.tile_start.append(start)
            head_ids += [h_idx] * nt
            tile_ids += list(range(nt))
            start += nt
        self.total_tiles = start
        self.head_ids = jnp.asarray(head_ids, dtype=jnp.int32)
        self.tile_ids = jnp.asarray(tile_ids, dtype=jnp.int32)

        # ---- parameter init (mirrors the PyTorch module).
        keys = jax.random.split(key, self.num_heads)
        w_layers = [[] for _ in range(self.num_hidden_linears)]
        v_layers = [[] for _ in range(self.num_hidden_linears)]
        w_out_tiles, b_out_tiles = [], []

        for h_idx in range(self.num_heads):
            hkeys = jax.random.split(keys[h_idx], self.num_hidden_linears + 1)
            # Hidden Linear + LayerNorm + ReLU layers.
            for l in range(self.num_hidden_linears):
                kw, kb = jax.random.split(hkeys[l])
                fan_in = dims[l]
                std = math.sqrt(2.0 / fan_in)          # kaiming_normal_, relu, fan_in
                w = std * jax.random.normal(kw, (dims[l + 1], fan_in), jnp.float32)
                bound = 1.0 / math.sqrt(fan_in)
                b = jax.random.uniform(kb, (dims[l + 1],), jnp.float32, -bound, bound)
                gamma = jnp.ones((dims[l + 1],), jnp.float32)
                beta = jnp.zeros((dims[l + 1],), jnp.float32)
                w_layers[l].append(w.T)                             # (in, out)
                v_layers[l].append(jnp.stack([b, gamma, beta]))     # (3, hidden)

            # Outermost linear: hyper_weight_init / hyper_bias_init -> kaiming/10.
            kw, kb = jax.random.split(hkeys[-1])
            out_f = self.out_features[h_idx]
            w_o = (math.sqrt(2.0 / self.hidden)
                   * jax.random.normal(kw, (out_f, self.hidden), jnp.float32)) / 10.0
            bound = 1.0 / math.sqrt(self.hidden)
            b_o = jax.random.uniform(kb, (out_f,), jnp.float32, -bound, bound)

            # Pre-transpose, zero-pad to this head's tile count, pack per-tile.
            nt = self.n_tiles[h_idx]
            w_pad = jnp.zeros((self.hidden, nt * self.tile_n), jnp.float32)
            w_pad = w_pad.at[:, :out_f].set(w_o.T)
            b_pad = jnp.zeros((nt * self.tile_n,), jnp.float32)
            b_pad = b_pad.at[:out_f].set(b_o)
            w_out_tiles.append(jnp.transpose(
                w_pad.reshape(self.hidden, nt, self.tile_n), (1, 0, 2)))
            b_out_tiles.append(b_pad.reshape(nt, 1, self.tile_n))

        # bf16 storage for the streamed weights (f32 accumulation in-kernel).
        self.w_hidden = [jnp.stack(ws).astype(jnp.bfloat16) for ws in w_layers]
        self.v_hidden = [jnp.stack(vs) for vs in v_layers]          # f32
        self.w_out = jnp.concatenate(w_out_tiles, axis=0).astype(jnp.bfloat16)
        self.b_out = jnp.concatenate(b_out_tiles, axis=0)           # f32

    def __call__(self, z):
        z = z.astype(jnp.float32)
        batch = z.shape[0]
        b_pad = _round_up(max(batch, 1), 8)          # full sublane occupancy
        if b_pad != batch:
            z = jnp.pad(z, ((0, b_pad - batch), (0, 0)))

        out_all = _hyper_forward(self.num_hidden_linears, self.tile_n,
                                 self.head_ids, self.tile_ids, z,
                                 self.w_hidden, self.v_hidden,
                                 self.w_out, self.b_out)

        params = OrderedDict()
        for name, shape, out_f, start, nt in zip(
                self.names, self.param_shapes, self.out_features,
                self.tile_start, self.n_tiles):
            tiles = out_all[start:start + nt]                      # (nt, b_pad, tile_n)
            flat = jnp.transpose(tiles, (1, 0, 2)).reshape(b_pad, nt * self.tile_n)
            params[name] = flat[:batch, :out_f].reshape((-1,) + shape)
        return params


# -----------------------------------------------------------------------------
if __name__ == "__main__":
    key = jax.random.PRNGKey(0)
    k_params, k_z = jax.random.split(key)

    # Synthetic hypo-module (a small 2-layer MLP) whose parameters are predicted.
    # First head (24*16=384 > 128) exercises the ragged multi-tile path.
    hypo_param_shapes = OrderedDict([
        ("net.0.weight", (24, 16)),
        ("net.0.bias", (24,)),
        ("net.1.weight", (1, 24)),
        ("net.1.bias", (1,)),
    ])

    hyper_in_features = 32
    hyper_hidden_layers = 1
    hyper_hidden_features = 32
    batch = 2

    # max_tile_n=128 forces 3 tiles for the first head -> tests cached-h reuse.
    hypernet = HyperNetworkPallas(hyper_in_features, hyper_hidden_layers,
                                  hyper_hidden_features, hypo_param_shapes,
                                  k_params, max_tile_n=128)

    z = jax.random.normal(k_z, (batch, hyper_in_features), dtype=jnp.float32)

    params = hypernet(z)
    jax.block_until_ready(params)

    # Shape check: (-1,) + param_shape semantics.
    for name, shape in hypo_param_shapes.items():
        assert params[name].shape == (batch,) + tuple(shape), (
            name, params[name].shape)

    # Numerical check against a pure-JAX reference using the same bf16 weights.
    def reference(z_in):
        outs = OrderedDict()
        for h_idx, (name, shape) in enumerate(hypo_param_shapes.items()):
            h = z_in.astype(jnp.float32)
            for l in range(hypernet.num_hidden_linears):
                w = hypernet.w_hidden[l][h_idx]
                v = hypernet.v_hidden[l][h_idx]
                h = jnp.dot(h.astype(jnp.bfloat16), w,
                            preferred_element_type=jnp.float32) + v[0:1]
                mu = jnp.mean(h, axis=-1, keepdims=True)
                var = jnp.maximum(
                    jnp.mean(h * h, axis=-1, keepdims=True) - mu * mu, 0.0)
                h = (h - mu) * jax.lax.rsqrt(var + 1e-5)
                h = h * v[1:2] + v[2:3]
                h = jnp.maximum(h, 0.0)
            nt = hypernet.n_tiles[h_idx]
            start = hypernet.tile_start[h_idx]
            w_o = hypernet.w_out[start:start + nt]
            b_o = hypernet.b_out[start:start + nt].reshape(nt * hypernet.tile_n)
            w_full = jnp.transpose(w_o, (1, 0, 2)).reshape(
                hypernet.hidden, nt * hypernet.tile_n)
            o = jnp.dot(h.astype(jnp.bfloat16), w_full,
                        preferred_element_type=jnp.float32) + b_o
            out_f = hypernet.out_features[h_idx]
            outs[name] = o[:, :out_f].reshape((-1,) + shape)
        return outs

    ref = reference(z)
    for name in hypo_param_shapes:
        diff = float(jnp.max(jnp.abs(params[name] - ref[name])))
        assert diff < 1e-2, (name, diff)

    print("KERNEL_OK")
</pallas_src>

<mosaic_0001>
module attributes {stable_mosaic.version = 11 : i64} {
  func.func @_hyper_heads_kernel(%arg0: i32, %arg1: memref<6xi32, #tpu.memory_space<smem>>, %arg2: memref<6xi32, #tpu.memory_space<smem>>, %arg3: memref<8x32xf32, #tpu.memory_space<vmem>>, %arg4: memref<1x32x32xbf16, #tpu.memory_space<vmem>>, %arg5: memref<1x3x32xf32, #tpu.memory_space<vmem>>, %arg6: memref<1x32x32xbf16, #tpu.memory_space<vmem>>, %arg7: memref<1x3x32xf32, #tpu.memory_space<vmem>>, %arg8: memref<1x32x128xbf16, #tpu.memory_space<vmem>>, %arg9: memref<1x1x128xf32, #tpu.memory_space<vmem>>, %arg10: memref<1x8x128xf32, #tpu.memory_space<vmem>>, %arg11: memref<8x32xf32, #tpu.memory_space<vmem>>) attributes {dimension_semantics = [#tpu.dimension_semantics<arbitrary>], iteration_bounds = array<i64: 6>, scalar_prefetch = 2 : i64, scratch_operands = 1 : i64, tpu.core_type = #tpu.core_type<tc>, window_params = [{pipeline_mode = #tpu.pipeline_mode<synchronous>, transform_indices = @transform_0, window_bounds = array<i64: 8, 32>}, {transform_indices = @transform_1, window_bounds = array<i64: 1, 32, 32>}, {transform_indices = @transform_2, window_bounds = array<i64: 1, 3, 32>}, {transform_indices = @transform_3, window_bounds = array<i64: 1, 32, 32>}, {transform_indices = @transform_4, window_bounds = array<i64: 1, 3, 32>}, {transform_indices = @transform_5, window_bounds = array<i64: 1, 32, 128>}, {transform_indices = @transform_6, window_bounds = array<i64: 1, 1, 128>}, {transform_indices = @transform_7, window_bounds = array<i64: 1, 8, 128>}]} {
    %0 = arith.index_cast %arg0 : i32 to index
    %1 = memref.load %arg2[%0] : memref<6xi32, #tpu.memory_space<smem>>
    %c0_i32 = arith.constant 0 : i32
    %2 = arith.cmpi eq, %1, %c0_i32 : i32
    %3 = arith.extui %2 : i1 to i32
    %c0_i32_0 = arith.constant 0 : i32
    %4 = arith.cmpi ne, %3, %c0_i32_0 : i32
    scf.if %4 {
      %c0_11 = arith.constant 0 : index
      %c0_12 = arith.constant 0 : index
      %17 = vector.load %arg3[%c0_11, %c0_12] : memref<8x32xf32, #tpu.memory_space<vmem>>, vector<8x32xf32>
      %c0_13 = arith.constant 0 : index
      %c0_14 = arith.constant 0 : index
      %c0_15 = arith.constant 0 : index
      %18 = vector.load %arg4[%c0_13, %c0_14, %c0_15] : memref<1x32x32xbf16, #tpu.memory_space<vmem>>, vector<1x32x32xbf16>
      %19 = vector.shape_cast %18 : vector<1x32x32xbf16> to vector<32x32xbf16>
      %c0_16 = arith.constant 0 : index
      %c0_17 = arith.constant 0 : index
      %c0_18 = arith.constant 0 : index
      %20 = vector.load %arg5[%c0_16, %c0_17, %c0_18] : memref<1x3x32xf32, #tpu.memory_space<vmem>>, vector<1x3x32xf32>
      %21 = vector.shape_cast %20 : vector<1x3x32xf32> to vector<3x32xf32>
      %22 = arith.truncf %17 : vector<8x32xf32> to vector<8x32xbf16>
      %cst_19 = arith.constant dense<0.000000e+00> : vector<8x32xf32>
      %23 = tpu.matmul %22, %19, %cst_19 {dimension_numbers = #tpu.dot_dimension_numbers<[1], [0], [0], [1], [0, 0, 1, 1], [], []>} : vector<8x32xbf16>, vector<32x32xbf16>, vector<8x32xf32> -> vector<8x32xf32>
      %24 = vector.extract_strided_slice %21 {offsets = [0, 0], sizes = [1, 32], strides = [1, 1]} : vector<3x32xf32> to vector<1x32xf32>
      %25 = vector.broadcast %24 : vector<1x32xf32> to vector<8x32xf32>
      %26 = arith.addf %23, %25 : vector<8x32xf32>
      %cst_20 = arith.constant dense<0.000000e+00> : vector<8xf32>
      %27 = vector.multi_reduction <add>, %26, %cst_20 [1] : vector<8x32xf32> to vector<8xf32>
      %28 = vector.shape_cast %27 : vector<8xf32> to vector<8x1xf32>
      %cst_21 = arith.constant 3.200000e+01 : f32
      %29 = vector.broadcast %cst_21 : f32 to vector<8x1xf32>
      %30 = arith.divf %28, %29 : vector<8x1xf32>
      %31 = arith.mulf %26, %26 : vector<8x32xf32>
      %cst_22 = arith.constant dense<0.000000e+00> : vector<8xf32>
      %32 = vector.multi_reduction <add>, %31, %cst_22 [1] : vector<8x32xf32> to vector<8xf32>
      %33 = vector.shape_cast %32 : vector<8xf32> to vector<8x1xf32>
      %cst_23 = arith.constant 3.200000e+01 : f32
      %34 = vector.broadcast %cst_23 : f32 to vector<8x1xf32>
      %35 = arith.divf %33, %34 : vector<8x1xf32>
      %36 = arith.mulf %30, %30 : vector<8x1xf32>
      %37 = arith.subf %35, %36 : vector<8x1xf32>
      %cst_24 = arith.constant 0.000000e+00 : f32
      %38 = vector.broadcast %cst_24 : f32 to vector<8x1xf32>
      %39 = arith.maximumf %37, %38 : vector<8x1xf32>
      %40 = vector.broadcast %30 : vector<8x1xf32> to vector<8x32xf32>
      %41 = arith.subf %26, %40 : vector<8x32xf32>
      %cst_25 = arith.constant 9.99999974E-6 : f32
      %42 = vector.broadcast %cst_25 : f32 to vector<8x1xf32>
      %43 = arith.addf %39, %42 : vector<8x1xf32>
      %44 = math.rsqrt %43 : vector<8x1xf32>
      %45 = vector.broadcast %44 : vector<8x1xf32> to vector<8x32xf32>
      %46 = arith.mulf %41, %45 : vector<8x32xf32>
      %47 = vector.extract_strided_slice %21 {offsets = [1, 0], sizes = [1, 32], strides = [1, 1]} : vector<3x32xf32> to vector<1x32xf32>
      %48 = vector.broadcast %47 : vector<1x32xf32> to vector<8x32xf32>
      %49 = arith.mulf %46, %48 : vector<8x32xf32>
      %50 = vector.extract_strided_slice %21 {offsets = [2, 0], sizes = [1, 32], strides = [1, 1]} : vector<3x32xf32> to vector<1x32xf32>
      %51 = vector.broadcast %50 : vector<1x32xf32> to vector<8x32xf32>
      %52 = arith.addf %49, %51 : vector<8x32xf32>
      %cst_26 = arith.constant 0.000000e+00 : f32
      %53 = vector.broadcast %cst_26 : f32 to vector<8x32xf32>
      %54 = arith.maximumf %52, %53 : vector<8x32xf32>
      %c0_27 = arith.constant 0 : index
      %c0_28 = arith.constant 0 : index
      %c0_29 = arith.constant 0 : index
      %55 = vector.load %arg6[%c0_27, %c0_28, %c0_29] : memref<1x32x32xbf16, #tpu.memory_space<vmem>>, vector<1x32x32xbf16>
      %56 = vector.shape_cast %55 : vector<1x32x32xbf16> to vector<32x32xbf16>
      %c0_30 = arith.constant 0 : index
      %c0_31 = arith.constant 0 : index
      %c0_32 = arith.constant 0 : index
      %57 = vector.load %arg7[%c0_30, %c0_31, %c0_32] : memref<1x3x32xf32, #tpu.memory_space<vmem>>, vector<1x3x32xf32>
      %58 = vector.shape_cast %57 : vector<1x3x32xf32> to vector<3x32xf32>
      %59 = arith.truncf %54 : vector<8x32xf32> to vector<8x32xbf16>
      %cst_33 = arith.constant dense<0.000000e+00> : vector<8x32xf32>
      %60 = tpu.matmul %59, %56, %cst_33 {dimension_numbers = #tpu.dot_dimension_numbers<[1], [0], [0], [1], [0, 0, 1, 1], [], []>} : vector<8x32xbf16>, vector<32x32xbf16>, vector<8x32xf32> -> vector<8x32xf32>
      %61 = vector.extract_strided_slice %58 {offsets = [0, 0], sizes = [1, 32], strides = [1, 1]} : vector<3x32xf32> to vector<1x32xf32>
      %62 = vector.broadcast %61 : vector<1x32xf32> to vector<8x32xf32>
      %63 = arith.addf %60, %62 : vector<8x32xf32>
      %cst_34 = arith.constant dense<0.000000e+00> : vector<8xf32>
      %64 = vector.multi_reduction <add>, %63, %cst_34 [1] : vector<8x32xf32> to vector<8xf32>
      %65 = vector.shape_cast %64 : vector<8xf32> to vector<8x1xf32>
      %cst_35 = arith.constant 3.200000e+01 : f32
      %66 = vector.broadcast %cst_35 : f32 to vector<8x1xf32>
      %67 = arith.divf %65, %66 : vector<8x1xf32>
      %68 = arith.mulf %63, %63 : vector<8x32xf32>
      %cst_36 = arith.constant dense<0.000000e+00> : vector<8xf32>
      %69 = vector.multi_reduction <add>, %68, %cst_36 [1] : vector<8x32xf32> to vector<8xf32>
      %70 = vector.shape_cast %69 : vector<8xf32> to vector<8x1xf32>
      %cst_37 = arith.constant 3.200000e+01 : f32
      %71 = vector.broadcast %cst_37 : f32 to vector<8x1xf32>
      %72 = arith.divf %70, %71 : vector<8x1xf32>
      %73 = arith.mulf %67, %67 : vector<8x1xf32>
      %74 = arith.subf %72, %73 : vector<8x1xf32>
      %cst_38 = arith.constant 0.000000e+00 : f32
      %75 = vector.broadcast %cst_38 : f32 to vector<8x1xf32>
      %76 = arith.maximumf %74, %75 : vector<8x1xf32>
      %77 = vector.broadcast %67 : vector<8x1xf32> to vector<8x32xf32>
      %78 = arith.subf %63, %77 : vector<8x32xf32>
      %cst_39 = arith.constant 9.99999974E-6 : f32
      %79 = vector.broadcast %cst_39 : f32 to vector<8x1xf32>
      %80 = arith.addf %76, %79 : vector<8x1xf32>
      %81 = math.rsqrt %80 : vector<8x1xf32>
      %82 = vector.broadcast %81 : vector<8x1xf32> to vector<8x32xf32>
      %83 = arith.mulf %78, %82 : vector<8x32xf32>
      %84 = vector.extract_strided_slice %58 {offsets = [1, 0], sizes = [1, 32], strides = [1, 1]} : vector<3x32xf32> to vector<1x32xf32>
      %85 = vector.broadcast %84 : vector<1x32xf32> to vector<8x32xf32>
      %86 = arith.mulf %83, %85 : vector<8x32xf32>
      %87 = vector.extract_strided_slice %58 {offsets = [2, 0], sizes = [1, 32], strides = [1, 1]} : vector<3x32xf32> to vector<1x32xf32>
      %88 = vector.broadcast %87 : vector<1x32xf32> to vector<8x32xf32>
      %89 = arith.addf %86, %88 : vector<8x32xf32>
      %cst_40 = arith.constant 0.000000e+00 : f32
      %90 = vector.broadcast %cst_40 : f32 to vector<8x32xf32>
      %91 = arith.maximumf %89, %90 : vector<8x32xf32>
      %c0_41 = arith.constant 0 : index
      %c0_42 = arith.constant 0 : index
      %92 = vector.load %arg11[%c0_41, %c0_42] : memref<8x32xf32, #tpu.memory_space<vmem>>, vector<8x32xf32>
      tpu.vector_store %arg11[%c0_41, %c0_42], %91 {strides = array<i32>} : memref<8x32xf32, #tpu.memory_space<vmem>>, vector<8x32xf32>,
    } else {
    }
    %c0 = arith.constant 0 : index
    %c0_1 = arith.constant 0 : index
    %5 = vector.load %arg11[%c0, %c0_1] : memref<8x32xf32, #tpu.memory_space<vmem>>, vector<8x32xf32>
    %6 = arith.truncf %5 : vector<8x32xf32> to vector<8x32xbf16>
    %c0_2 = arith.constant 0 : index
    %c0_3 = arith.constant 0 : index
    %c0_4 = arith.constant 0 : index
    %7 = vector.load %arg8[%c0_2, %c0_3, %c0_4] : memref<1x32x128xbf16, #tpu.memory_space<vmem>>, vector<1x32x128xbf16>
    %8 = vector.shape_cast %7 : vector<1x32x128xbf16> to vector<32x128xbf16>
    %cst = arith.constant dense<0.000000e+00> : vector<8x128xf32>
    %9 = tpu.matmul %6, %8, %cst {dimension_numbers = #tpu.dot_dimension_numbers<[1], [0], [0], [1], [0, 0, 1, 1], [], []>} : vector<8x32xbf16>, vector<32x128xbf16>, vector<8x128xf32> -> vector<8x128xf32>
    %c0_5 = arith.constant 0 : index
    %c0_6 = arith.constant 0 : index
    %c0_7 = arith.constant 0 : index
    %10 = vector.load %arg9[%c0_5, %c0_6, %c0_7] : memref<1x1x128xf32, #tpu.memory_space<vmem>>, vector<1x1x128xf32>
    %11 = vector.shape_cast %10 : vector<1x1x128xf32> to vector<1x128xf32>
    %12 = vector.broadcast %11 : vector<1x128xf32> to vector<8x128xf32>
    %13 = arith.addf %9, %12 : vector<8x128xf32>
    %c0_8 = arith.constant 0 : index
    %c0_9 = arith.constant 0 : index
    %c0_10 = arith.constant 0 : index
    %14 = vector.load %arg10[%c0_8, %c0_9, %c0_10] : memref<1x8x128xf32, #tpu.memory_space<vmem>>, vector<1x8x128xf32>
    %15 = vector.shape_cast %14 : vector<1x8x128xf32> to vector<8x128xf32>
    %16 = vector.shape_cast %13 : vector<8x128xf32> to vector<1x8x128xf32>
    tpu.vector_store %arg10[%c0_8, %c0_9, %c0_10], %16 {strides = array<i32>} : memref<1x8x128xf32, #tpu.memory_space<vmem>>, vector<1x8x128xf32>,
    return
  }
  func.func @transform_0(%arg0: i32, %arg1: memref<6xi32, #tpu.memory_space<smem>>, %arg2: memref<6xi32, #tpu.memory_space<smem>>) -> (i32, i32) {
    %c0_i32 = arith.constant 0 : i32
    %c0_i32_0 = arith.constant 0 : i32
    %c0_i32_1 = arith.constant 0 : i32
    return %c0_i32, %c0_i32_0 : i32, i32
  }
  func.func @transform_1(%arg0: i32, %arg1: memref<6xi32, #tpu.memory_space<smem>>, %arg2: memref<6xi32, #tpu.memory_space<smem>>) -> (i32, i32, i32) {
    %0 = arith.index_cast %arg0 : i32 to index
    %1 = memref.load %arg1[%0] : memref<6xi32, #tpu.memory_space<smem>>
    %c0_i32 = arith.constant 0 : i32
    %c0_i32_0 = arith.constant 0 : i32
    %c0_i32_1 = arith.constant 0 : i32
    return %1, %c0_i32, %c0_i32_0 : i32, i32, i32
  }
  func.func @transform_2(%arg0: i32, %arg1: memref<6xi32, #tpu.memory_space<smem>>, %arg2: memref<6xi32, #tpu.memory_space<smem>>) -> (i32, i32, i32) {
    %0 = arith.index_cast %arg0 : i32 to index
    %1 = memref.load %arg1[%0] : memref<6xi32, #tpu.memory_space<smem>>
    %c0_i32 = arith.constant 0 : i32
    %c0_i32_0 = arith.constant 0 : i32
    %c0_i32_1 = arith.constant 0 : i32
    return %1, %c0_i32, %c0_i32_0 : i32, i32, i32
  }
  func.func @transform_3(%arg0: i32, %arg1: memref<6xi32, #tpu.memory_space<smem>>, %arg2: memref<6xi32, #tpu.memory_space<smem>>) -> (i32, i32, i32) {
    %0 = arith.index_cast %arg0 : i32 to index
    %1 = memref.load %arg1[%0] : memref<6xi32, #tpu.memory_space<smem>>
    %c0_i32 = arith.constant 0 : i32
    %c0_i32_0 = arith.constant 0 : i32
    %c0_i32_1 = arith.constant 0 : i32
    return %1, %c0_i32, %c0_i32_0 : i32, i32, i32
  }
  func.func @transform_4(%arg0: i32, %arg1: memref<6xi32, #tpu.memory_space<smem>>, %arg2: memref<6xi32, #tpu.memory_space<smem>>) -> (i32, i32, i32) {
    %0 = arith.index_cast %arg0 : i32 to index
    %1 = memref.load %arg1[%0] : memref<6xi32, #tpu.memory_space<smem>>
    %c0_i32 = arith.constant 0 : i32
    %c0_i32_0 = arith.constant 0 : i32
    %c0_i32_1 = arith.constant 0 : i32
    return %1, %c0_i32, %c0_i32_0 : i32, i32, i32
  }
  func.func @transform_5(%arg0: i32, %arg1: memref<6xi32, #tpu.memory_space<smem>>, %arg2: memref<6xi32, #tpu.memory_space<smem>>) -> (i32, i32, i32) {
    %c0_i32 = arith.constant 0 : i32
    %c0_i32_0 = arith.constant 0 : i32
    %c0_i32_1 = arith.constant 0 : i32
    return %arg0, %c0_i32, %c0_i32_0 : i32, i32, i32
  }
  func.func @transform_6(%arg0: i32, %arg1: memref<6xi32, #tpu.memory_space<smem>>, %arg2: memref<6xi32, #tpu.memory_space<smem>>) -> (i32, i32, i32) {
    %c0_i32 = arith.constant 0 : i32
    %c0_i32_0 = arith.constant 0 : i32
    %c0_i32_1 = arith.constant 0 : i32
    return %arg0, %c0_i32, %c0_i32_0 : i32, i32, i32
  }
  func.func @transform_7(%arg0: i32, %arg1: memref<6xi32, #tpu.memory_space<smem>>, %arg2: memref<6xi32, #tpu.memory_space<smem>>) -> (i32, i32, i32) {
    %c0_i32 = arith.constant 0 : i32
    %c0_i32_0 = arith.constant 0 : i32
    %c0_i32_1 = arith.constant 0 : i32
    return %arg0, %c0_i32, %c0_i32_0 : i32, i32, i32
  }
}

</mosaic_0001>

<llo_original>
// kernel: _hyper_forward.1
$region0: #{_hyper_forward.1}
  #allocation0 [shape = 'u32[]', space=smem, size = 0x4, offset = 0x4, fixed_abs, tag = 'smem constant byte address 0x4 - core index']
  #allocation1 [shape = 'u32[144,128]{1,0:T(1,128)}', space=vmem, size = 0x12000, scoped, tag = 'internal scratch']
  #allocation2 [shape = 'f32[8,32]{1,0:T(8,128)}', space=vmem, size = 0x1000, scoped, tag = 'scratch operand']
  #allocation3 [shape = 's32[1]{0}', space=sflag, size = 0x4, scoped, tag = 'scoped memory for _hyper_forward.1']
  #allocation4 [shape = 'u8[512]{0}', space=smem, size = 0x200, scoped, tag = 'prefetched SMEM operand 0']
  #allocation5 [shape = 'u8[512]{0}', space=smem, size = 0x200, scoped, tag = 'prefetched SMEM operand 1']
  %s0 = inlined_call_operand.vmem [shape: s32[6], index: 0, kind: input, shape index: {}]
  %s1 = inlined_call_operand.vmem [shape: s32[6], index: 1, kind: input, shape index: {}]
  %s2 = inlined_call_operand.vmem [shape: f32[8,32], index: 2, kind: input, shape index: {}]
  %s3 = inlined_call_operand.hbm [shape: bf16[4,32,32], index: 3, kind: input, shape index: {}]
  %s4 = inlined_call_operand.vmem [shape: f32[4,3,32], index: 4, kind: input, shape index: {}]
  %s5 = inlined_call_operand.hbm [shape: bf16[4,32,32], index: 5, kind: input, shape index: {}]
  %s6 = inlined_call_operand.vmem [shape: f32[4,3,32], index: 6, kind: input, shape index: {}]
  %s7 = inlined_call_operand.hbm [shape: bf16[6,32,128], index: 7, kind: input, shape index: {}]
  %s8 = inlined_call_operand.vmem [shape: f32[6,1,128], index: 8, kind: input, shape index: {}]
  %s9 = inlined_call_operand.hbm [shape: f32[6,8,128], index: 9, kind: output, shape index: {}]
  %s10 = sld [smem:[#allocation0]]
  $region77: #{_hyper_forward.1} parent=0
    _
  %s12 = ssub.s32 1, %s10
  %s13 = scalar_select 0, %s12, %s10
  %s14 = sshll.u32 %s0, 4
  %s15 = int_to_ptr.vmem [resolvable:$true] %s14
  %17 = dma.vmem_to_smem %s15, 16, [#allocation4], [#allocation3]
  %s18 = sshll.u32 %s1, 4
  %s19 = int_to_ptr.vmem [resolvable:$true] %s18
  %21 = dma.vmem_to_smem %s19, 16, [#allocation5], [#allocation3]
  %22 = dma.done [#allocation3], 32
  %23 = sfence
  $region1: #{_hyper_forward.1} parent=0
    #allocation6 [shape = 'u8[16384]{0}', space=vmem, size = 0x4000, scoped, tag = 'input window, operand 3']
    #allocation7 [shape = 's32[2]{0}', space=sflag, size = 0x8, scoped, tag = 'scoped memory for _hyper_forward.1']
    #allocation8 [shape = 's32[2]{0}', space=sflag, size = 0x8, scoped, tag = 'scoped memory for _hyper_forward.1']
    #allocation9 [shape = 'u8[16384]{0}', space=vmem, size = 0x4000, scoped, tag = 'input window, operand 5']
    #allocation10 [shape = 's32[2]{0}', space=sflag, size = 0x8, scoped, tag = 'scoped memory for _hyper_forward.1']
    #allocation11 [shape = 'u8[16384]{0}', space=vmem, size = 0x4000, scoped, tag = 'input window, operand 7']
    #allocation12 [shape = 'u8[8192]{0}', space=vmem, size = 0x2000, scoped, tag = 'output window, operand 0']
    %24 = vsyncpa [#allocation7], 0
    %s25 = scalar_lea.sflag [#allocation7], 1
    %26 = vsyncpa %s25, 0
    %27 = vsyncpa [#allocation10], 0
    %s28 = scalar_lea.sflag [#allocation10], 1
    %29 = vsyncpa %s28, 0
    %30 = vsyncpa [#allocation8], 0
    %s31 = scalar_lea.sflag [#allocation8], 1
    %32 = vsyncpa %s31, 0
    loop: start=0, step=1, limit=8
    $region2: #{_hyper_forward.1} parent=1 // loop_pre_header
      _
    $region3: #{_hyper_forward.1} parent=1 // loop_header
      %s34 = sphi 0, %s38
      %p35 = scmp.ge.s32.totalorder %s34, 8
      %s42 = sphi 0, %s42
      %s44 = sphi 0, %s42
      %s45 = sphi 0, %s44
      %s59 = sphi 0, %s45
      %s67 = sphi 0, %s69
      %s70 = sphi 0, %s67
      %s71 = sphi 0, %s70
      %s87 = sphi 0, %s71
      %s95 = sphi 0, %s97
      %s98 = sphi 0, %s95
      %s99 = sphi 0, %s98
      %s115 = sphi 0, %s99
      %s123 = sphi 0, %s125
      %s126 = sphi 0, %s123
      %s127 = sphi 0, %s126
      %s143 = sphi 0, %s127
      %s151 = sphi 0, %s153
      %s154 = sphi 0, %s151
      %s155 = sphi 0, %s154
      %s171 = sphi 0, %s155
      %s177 = sphi 0, %s179
      %s180 = sphi 0, %s177
      %s181 = sphi 0, %s180
      %s197 = sphi 0, %s181
      %s203 = sphi 0, %s205
      %s206 = sphi 0, %s203
      %s207 = sphi 0, %s206
      %s223 = sphi 0, %s207
      %s229 = sphi 0, %s231
      %s232 = sphi 0, %s229
      %s233 = sphi 0, %s232
      %s249 = sphi 0, %s233
    $region4: #{_hyper_forward.1} parent=1 // loop_header_branch
      %37 = sbr.rel (%p35) target = $region8
    $region5: #{_hyper_forward.1} parent=1 // loop_body
      %s39 = ssub.s32 %s34, 1
      %s40 = ssub.s32 %s34, 2
      %s41 = sadd.s32 %s34, 1
      %s43 = sadd.s32 %s42, 1
      %p46 = scmp.eq.s32.totalorder %s34, 5
      %p47 = scmp.ne.s32.totalorder %s42, %s44
      %p48 = scmp.eq.s32.totalorder %s34, 0
      %p49 = por %p47, %p48
      %p50 = scmp.ne.s32.totalorder %s42, %s44
      %p51 = scmp.eq.s32.totalorder %s39, 5
      %p52 = por %p50, %p51
      %p53 = scmp.ne.s32.totalorder %s44, %s45
      %p54 = scmp.eq.s32.totalorder %s39, 0
      %p55 = por %p53, %p54
      %p56 = scmp.ne.s32.totalorder %s44, %s45
      %p57 = scmp.eq.s32.totalorder %s40, 5
      %p58 = por %p56, %p57
      %p60 = scmp.ne.s32.totalorder %s45, %s59
      %p61 = scmp.eq.s32.totalorder %s40, 0
      %p62 = por %p60, %p61
      %s63 = sld [smem:[#allocation4 + %s34]]
      %s64 = sld [smem:[#allocation4 + %s41]]
      %s65 = ssub.s32 %s63, %s64
      %p66 = scmp.eq.s32.totalorder %s65, 0
      %s68 = sadd.s32 %s67, 1
      %s69 = scalar_select %p66, %s67, %s68
      %p72 = pneg %p66
      %p73 = scmp.eq.s32.totalorder %s34, 5
      %p74 = por %p72, %p73
      %p75 = scmp.ne.s32.totalorder %s67, %s70
      %p76 = scmp.eq.s32.totalorder %s34, 0
      %p77 = por %p75, %p76
      %p78 = scmp.ne.s32.totalorder %s67, %s70
      %p79 = scmp.eq.s32.totalorder %s39, 5
      %p80 = por %p78, %p79
      %p81 = scmp.ne.s32.totalorder %s70, %s71
      %p82 = scmp.eq.s32.totalorder %s39, 0
      %p83 = por %p81, %p82
      %p84 = scmp.ne.s32.totalorder %s70, %s71
      %p85 = scmp.eq.s32.totalorder %s40, 5
      %p86 = por %p84, %p85
      %p88 = scmp.ne.s32.totalorder %s71, %s87
      %p89 = scmp.eq.s32.totalorder %s40, 0
      %p90 = por %p88, %p89
      %s91 = sld [smem:[#allocation4 + %s34]]
      %s92 = sld [smem:[#allocation4 + %s41]]
      %s93 = ssub.s32 %s91, %s92
      %p94 = scmp.eq.s32.totalorder %s93, 0
      %s96 = sadd.s32 %s95, 1
      %s97 = scalar_select %p94, %s95, %s96
      %p100 = pneg %p94
      %p101 = scmp.eq.s32.totalorder %s34, 5
      %p102 = por %p100, %p101
      %p103 = scmp.ne.s32.totalorder %s95, %s98
      %p104 = scmp.eq.s32.totalorder %s34, 0
      %p105 = por %p103, %p104
      %p106 = scmp.ne.s32.totalorder %s95, %s98
      %p107 = scmp.eq.s32.totalorder %s39, 5
      %p108 = por %p106, %p107
      %p109 = scmp.ne.s32.totalorder %s98, %s99
      %p110 = scmp.eq.s32.totalorder %s39, 0
      %p111 = por %p109, %p110
      %p112 = scmp.ne.s32.totalorder %s98, %s99
      %p113 = scmp.eq.s32.totalorder %s40, 5
      %p114 = por %p112, %p113
      %p116 = scmp.ne.s32.totalorder %s99, %s115
      %p117 = scmp.eq.s32.totalorder %s40, 0
      %p118 = por %p116, %p117
      %s119 = sld [smem:[#allocation4 + %s34]]
      %s120 = sld [smem:[#allocation4 + %s41]]
      %s121 = ssub.s32 %s119, %s120
      %p122 = scmp.eq.s32.totalorder %s121, 0
      %s124 = sadd.s32 %s123, 1
      %s125 = scalar_select %p122, %s123, %s124
      %p128 = pneg %p122
      %p129 = scmp.eq.s32.totalorder %s34, 5
      %p130 = por %p128, %p129
      %p131 = scmp.ne.s32.totalorder %s123, %s126
      %p132 = scmp.eq.s32.totalorder %s34, 0
      %p133 = por %p131, %p132
      %p134 = scmp.ne.s32.totalorder %s123, %s126
      %p135 = scmp.eq.s32.totalorder %s39, 5
      %p136 = por %p134, %p135
      %p137 = scmp.ne.s32.totalorder %s126, %s127
      %p138 = scmp.eq.s32.totalorder %s39, 0
      %p139 = por %p137, %p138
      %p140 = scmp.ne.s32.totalorder %s126, %s127
      %p141 = scmp.eq.s32.totalorder %s40, 5
      %p142 = por %p140, %p141
      %p144 = scmp.ne.s32.totalorder %s127, %s143
      %p145 = scmp.eq.s32.totalorder %s40, 0
      %p146 = por %p144, %p145
      %s147 = sld [smem:[#allocation4 + %s34]]
      %s148 = sld [smem:[#allocation4 + %s41]]
      %s149 = ssub.s32 %s147, %s148
      %p150 = scmp.eq.s32.totalorder %s149, 0
      %s152 = sadd.s32 %s151, 1
      %s153 = scalar_select %p150, %s151, %s152
      %p156 = pneg %p150
      %p157 = scmp.eq.s32.totalorder %s34, 5
      %p158 = por %p156, %p157
      %p159 = scmp.ne.s32.totalorder %s151, %s154
      %p160 = scmp.eq.s32.totalorder %s34, 0
      %p161 = por %p159, %p160
      %p162 = scmp.ne.s32.totalorder %s151, %s154
      %p163 = scmp.eq.s32.totalorder %s39, 5
      %p164 = por %p162, %p163
      %p165 = scmp.ne.s32.totalorder %s154, %s155
      %p166 = scmp.eq.s32.totalorder %s39, 0
      %p167 = por %p165, %p166
      %p168 = scmp.ne.s32.totalorder %s154, %s155
      %p169 = scmp.eq.s32.totalorder %s40, 5
      %p170 = por %p168, %p169
      %p172 = scmp.ne.s32.totalorder %s155, %s171
      %p173 = scmp.eq.s32.totalorder %s40, 0
      %p174 = por %p172, %p173
      %s175 = ssub.s32 %s34, %s41
      %p176 = scmp.eq.s32.totalorder %s175, 0
      %s178 = sadd.s32 %s177, 1
      %s179 = scalar_select %p176, %s177, %s178
      %p182 = pneg %p176
      %p183 = scmp.eq.s32.totalorder %s34, 5
      %p184 = por %p182, %p183
      %p185 = scmp.ne.s32.totalorder %s177, %s180
      %p186 = scmp.eq.s32.totalorder %s34, 0
      %p187 = por %p185, %p186
      %p188 = scmp.ne.s32.totalorder %s177, %s180
      %p189 = scmp.eq.s32.totalorder %s39, 5
      %p190 = por %p188, %p189
      %p191 = scmp.ne.s32.totalorder %s180, %s181
      %p192 = scmp.eq.s32.totalorder %s39, 0
      %p193 = por %p191, %p192
      %p194 = scmp.ne.s32.totalorder %s180, %s181
      %p195 = scmp.eq.s32.totalorder %s40, 5
      %p196 = por %p194, %p195
      %p198 = scmp.ne.s32.totalorder %s181, %s197
      %p199 = scmp.eq.s32.totalorder %s40, 0
      %p200 = por %p198, %p199
      %s201 = ssub.s32 %s34, %s41
      %p202 = scmp.eq.s32.totalorder %s201, 0
      %s204 = sadd.s32 %s203, 1
      %s205 = scalar_select %p202, %s203, %s204
      %p208 = pneg %p202
      %p209 = scmp.eq.s32.totalorder %s34, 5
      %p210 = por %p208, %p209
      %p211 = scmp.ne.s32.totalorder %s203, %s206
      %p212 = scmp.eq.s32.totalorder %s34, 0
      %p213 = por %p211, %p212
      %p214 = scmp.ne.s32.totalorder %s203, %s206
      %p215 = scmp.eq.s32.totalorder %s39, 5
      %p216 = por %p214, %p215
      %p217 = scmp.ne.s32.totalorder %s206, %s207
      %p218 = scmp.eq.s32.totalorder %s39, 0
      %p219 = por %p217, %p218
      %p220 = scmp.ne.s32.totalorder %s206, %s207
      %p221 = scmp.eq.s32.totalorder %s40, 5
      %p222 = por %p220, %p221
      %p224 = scmp.ne.s32.totalorder %s207, %s223
      %p225 = scmp.eq.s32.totalorder %s40, 0
      %p226 = por %p224, %p225
      %s227 = ssub.s32 %s34, %s41
      %p228 = scmp.eq.s32.totalorder %s227, 0
      %s230 = sadd.s32 %s229, 1
      %s231 = scalar_select %p228, %s229, %s230
      %p234 = pneg %p228
      %p235 = scmp.eq.s32.totalorder %s34, 5
      %p236 = por %p234, %p235
      %p237 = scmp.ne.s32.totalorder %s229, %s232
      %p238 = scmp.eq.s32.totalorder %s34, 0
      %p239 = por %p237, %p238
      %p240 = scmp.ne.s32.totalorder %s229, %s232
      %p241 = scmp.eq.s32.totalorder %s39, 5
      %p242 = por %p240, %p241
      %p243 = scmp.ne.s32.totalorder %s232, %s233
      %p244 = scmp.eq.s32.totalorder %s39, 0
      %p245 = por %p243, %p244
      %p246 = scmp.ne.s32.totalorder %s232, %s233
      %p247 = scmp.eq.s32.totalorder %s40, 5
      %p248 = por %p246, %p247
      %p250 = scmp.ne.s32.totalorder %s233, %s249
      %p251 = scmp.eq.s32.totalorder %s40, 0
      %p252 = por %p250, %p251
      %p253 = scmp.le.s32.totalorder 1, %s34
      %p254 = scmp.lt.s32.totalorder %s34, 7
      %p255 = pnand %p253, %p254
      %p256 = pneg %p255
      // Predicated region
      $region9: #{_hyper_forward.1} parent=5 // pred_check
        _
      $region10: #{_hyper_forward.1} parent=5 // pred_check_branch
        %258 = sbr.rel (%p255) target = $region12
      $region11: #{_hyper_forward.1} parent=5 // pred_region
        %s259 = ssub.s32 %s34, 1
        // Predicated region
        $region13: #{_hyper_forward.1} parent=11 // pred_check
          %p260 = pneg %p55
        $region14: #{_hyper_forward.1} parent=11 // pred_check_branch
          %262 = sbr.rel (%p260) target = $region16
        $region15: #{_hyper_forward.1} parent=11 // pred_region
          _
        $region16: #{_hyper_forward.1} parent=11 // pred_fallthru
          _
      $region12: #{_hyper_forward.1} parent=5 // pred_fallthru
        _
      %p263 = scmp.lt.s32.totalorder %s34, 6
      // Predicated region
      $region17: #{_hyper_forward.1} parent=5 // pred_check
        %p264 = pneg %p263
      $region18: #{_hyper_forward.1} parent=5 // pred_check_branch
        %266 = sbr.rel (%p264) target = $region20
      $region19: #{_hyper_forward.1} parent=5 // pred_region
        // Predicated region
        $region21: #{_hyper_forward.1} parent=19 // pred_check
          %p267 = pneg %p77
        $region22: #{_hyper_forward.1} parent=19 // pred_check_branch
          %269 = sbr.rel (%p267) target = $region24
        $region23: #{_hyper_forward.1} parent=19 // pred_region
          %s270 = sand.u32 %s67, 1
          %s271 = scalar_lea.sflag [#allocation7], %s270
          %s272 = sand.u32 %s67, 1
          %s273 = smul.addr %s272, 16
          %s274 = scalar_lea.vmem [#allocation6], %s273
          %s275 = sld [smem:[#allocation4 + %s34]]
          %s277 = ssub.s32 256, 256
          %278 = vsyncadd %s271, %s277
          %s279 = smul.addr %s275, 4
          %s280 = smul.addr %s279, 64
          %s281 = scalar_lea.hbm %s3, %s280
          %s282 = sshll.u32 %s274, 4
          %s283 = int_to_ptr.vmem [resolvable:$true] %s282
          %288 = dma.hbm_to_vmem [thread:$0]  %s281, 256, %s283, %s271, 64, 64, 4
        $region24: #{_hyper_forward.1} parent=19 // pred_fallthru
          _
        // Predicated region
        $region25: #{_hyper_forward.1} parent=19 // pred_check
          %p289 = pneg %p105
        $region26: #{_hyper_forward.1} parent=19 // pred_check_branch
          %291 = sbr.rel (%p289) target = $region28
        $region27: #{_hyper_forward.1} parent=19 // pred_region
          %s292 = sld [smem:[#allocation4 + %s34]]
          %p293 = scmp.lt.s32.totalorder %s292, 3
          %s294 = scalar_select %p293, %s292, 3
          %s295 = smul.addr %s294, 4
          %s296 = scalar_lea.vmem %s4, %s295
          %s297 = sld [smem:[#allocation4 + %s34]]
        $region28: #{_hyper_forward.1} parent=19 // pred_fallthru
          _
        // Predicated region
        $region29: #{_hyper_forward.1} parent=19 // pred_check
          %p298 = pneg %p133
        $region30: #{_hyper_forward.1} parent=19 // pred_check_branch
          %300 = sbr.rel (%p298) target = $region32
        $region31: #{_hyper_forward.1} parent=19 // pred_region
          %s301 = sand.u32 %s34, 1
          %s302 = scalar_lea.sflag [#allocation10], %s301
          %s303 = sand.u32 %s123, 1
          %s304 = smul.addr %s303, 16
          %s305 = scalar_lea.vmem [#allocation9], %s304
          %s306 = sld [smem:[#allocation4 + %s34]]
          %s308 = ssub.s32 256, 256
          %309 = vsyncadd %s302, %s308
          %s310 = smul.addr %s306, 4
          %s311 = smul.addr %s310, 64
          %s312 = scalar_lea.hbm %s5, %s311
          %s313 = sshll.u32 %s305, 4
          %s314 = int_to_ptr.vmem [resolvable:$true] %s313
          %319 = dma.hbm_to_vmem [thread:$0]  %s312, 256, %s314, %s302, 64, 64, 4
        $region32: #{_hyper_forward.1} parent=19 // pred_fallthru
          _
        // Predicated region
        $region33: #{_hyper_forward.1} parent=19 // pred_check
          %p320 = pneg %p161
        $region34: #{_hyper_forward.1} parent=19 // pred_check_branch
          %322 = sbr.rel (%p320) target = $region36
        $region35: #{_hyper_forward.1} parent=19 // pred_region
          %s323 = sld [smem:[#allocation4 + %s34]]
          %p324 = scmp.lt.s32.totalorder %s323, 3
          %s325 = scalar_select %p324, %s323, 3
          %s326 = smul.addr %s325, 4
          %s327 = scalar_lea.vmem %s6, %s326
          %s328 = sld [smem:[#allocation4 + %s34]]
        $region36: #{_hyper_forward.1} parent=19 // pred_fallthru
          _
        // Predicated region
        $region37: #{_hyper_forward.1} parent=19 // pred_check
          %p329 = pneg %p187
        $region38: #{_hyper_forward.1} parent=19 // pred_check_branch
          %331 = sbr.rel (%p329) target = $region40
        $region39: #{_hyper_forward.1} parent=19 // pred_region
          %s332 = sand.u32 %s34, 1
          %s333 = scalar_lea.sflag [#allocation10], %s332
          %s334 = sand.u32 %s177, 1
          %s335 = smul.addr %s334, 16
          %s336 = scalar_lea.vmem [#allocation11], %s335
          %s338 = ssub.s32 256, 256
          %339 = vsyncadd %s333, %s338
          %s340 = smul.addr %s34, 4
          %s341 = smul.addr %s340, 64
          %s342 = scalar_lea.hbm %s7, %s341
          %s343 = sshll.u32 %s336, 4
          %s344 = int_to_ptr.vmem [resolvable:$true] %s343
          %349 = dma.hbm_to_vmem [thread:$0]  %s342, 256, %s344, %s333, 64, 64, 4
        $region40: #{_hyper_forward.1} parent=19 // pred_fallthru
          _
        // Predicated region
        $region41: #{_hyper_forward.1} parent=19 // pred_check
          %p350 = pneg %p213
        $region42: #{_hyper_forward.1} parent=19 // pred_check_branch
          %352 = sbr.rel (%p350) target = $region44
        $region43: #{_hyper_forward.1} parent=19 // pred_region
          %p353 = scmp.lt.s32.totalorder %s34, 5
          %s354 = scalar_select %p353, %s34, 5
          %s355 = scalar_lea.vmem %s8, %s354
        $region44: #{_hyper_forward.1} parent=19 // pred_fallthru
          _
      $region20: #{_hyper_forward.1} parent=5 // pred_fallthru
        _
      %p356 = scmp.le.s32.totalorder 1, %s34
      %p357 = scmp.lt.s32.totalorder %s34, 7
      %p358 = pnand %p356, %p357
      %p359 = pneg %p358
      // Predicated region
      $region45: #{_hyper_forward.1} parent=5 // pred_check
        _
      $region46: #{_hyper_forward.1} parent=5 // pred_check_branch
        %361 = sbr.rel (%p358) target = $region48
      $region47: #{_hyper_forward.1} parent=5 // pred_region
        %s362 = ssub.s32 %s34, 1
        %s363 = sand.u32 %s70, 1
        %s364 = scalar_lea.sflag [#allocation7], %s363
        %s365 = sand.u32 %s70, 1
        %s366 = smul.addr %s365, 16
        %s367 = scalar_lea.vmem [#allocation6], %s366
        // Predicated region
        $region49: #{_hyper_forward.1} parent=47 // pred_check
          %p368 = pneg %p83
        $region50: #{_hyper_forward.1} parent=47 // pred_check_branch
          %370 = sbr.rel (%p368) target = $region52
        $region51: #{_hyper_forward.1} parent=47 // pred_region
          %371 = dma.done %s364, 256
        $region52: #{_hyper_forward.1} parent=47 // pred_fallthru
          _
        %s372 = sand.u32 %s39, 1
        %s373 = scalar_lea.sflag [#allocation10], %s372
        %s374 = sand.u32 %s126, 1
        %s375 = smul.addr %s374, 16
        %s376 = scalar_lea.vmem [#allocation9], %s375
        // Predicated region
        $region53: #{_hyper_forward.1} parent=47 // pred_check
          %p377 = pneg %p139
        $region54: #{_hyper_forward.1} parent=47 // pred_check_branch
          %379 = sbr.rel (%p377) target = $region56
        $region55: #{_hyper_forward.1} parent=47 // pred_region
          %380 = dma.done %s373, 256
        $region56: #{_hyper_forward.1} parent=47 // pred_fallthru
          _
        %s381 = sand.u32 %s39, 1
        %s382 = scalar_lea.sflag [#allocation10], %s381
        %s383 = sand.u32 %s180, 1
        %s384 = smul.addr %s383, 16
        %s385 = scalar_lea.vmem [#allocation11], %s384
        // Predicated region
        $region57: #{_hyper_forward.1} parent=47 // pred_check
          %p386 = pneg %p193
        $region58: #{_hyper_forward.1} parent=47 // pred_check_branch
          %388 = sbr.rel (%p386) target = $region60
        $region59: #{_hyper_forward.1} parent=47 // pred_region
          %389 = dma.done %s382, 256
        $region60: #{_hyper_forward.1} parent=47 // pred_fallthru
          _
        %p390 = pneg %p55
        %p391 = pneg %p52
        %s392 = sand.u32 %s70, 1
        %s393 = scalar_lea.sflag [#allocation7], %s392
        %s394 = sand.u32 %s70, 1
        %s395 = smul.addr %s394, 16
        %s396 = scalar_lea.vmem [#allocation6], %s395
        %p397 = pneg %p83
        %p398 = pneg %p80
        %s399 = sld [smem:[#allocation4 + %s39]]
        %p400 = scmp.lt.s32.totalorder %s399, 3
        %s401 = scalar_select %p400, %s399, 3
        %s402 = smul.addr %s401, 4
        %s403 = scalar_lea.vmem %s4, %s402
        %p404 = pneg %p111
        %p405 = pneg %p108
        %s406 = sand.u32 %s39, 1
        %s407 = scalar_lea.sflag [#allocation10], %s406
        %s408 = sand.u32 %s126, 1
        %s409 = smul.addr %s408, 16
        %s410 = scalar_lea.vmem [#allocation9], %s409
        %p411 = pneg %p139
        %p412 = pneg %p136
        %s413 = sld [smem:[#allocation4 + %s39]]
        %p414 = scmp.lt.s32.totalorder %s413, 3
        %s415 = scalar_select %p414, %s413, 3
        %s416 = smul.addr %s415, 4
        %s417 = scalar_lea.vmem %s6, %s416
        %p418 = pneg %p167
        %p419 = pneg %p164
        %s420 = sand.u32 %s39, 1
        %s421 = scalar_lea.sflag [#allocation10], %s420
        %s422 = sand.u32 %s180, 1
        %s423 = smul.addr %s422, 16
        %s424 = scalar_lea.vmem [#allocation11], %s423
        %p425 = pneg %p193
        %p426 = pneg %p190
        %p427 = scmp.lt.s32.totalorder %s39, 5
        %s428 = scalar_select %p427, %s39, 5
        %s429 = scalar_lea.vmem %s8, %s428
        %p430 = pneg %p219
        %p431 = pneg %p216
        %p432 = pneg %p245
        %p433 = pneg %p242
        %s434 = sand.u32 %s232, 1
        %s435 = scalar_lea.sflag [#allocation8], %s434
        %s436 = sand.u32 %s232, 1
        %s437 = smul.addr %s436, 8
        %s438 = scalar_lea.vmem [#allocation12], %s437
        %s439 = sld [smem:[#allocation4 + %s39]]
        %s440 = sld [smem:[#allocation4 + %s39]]
        %p441 = scmp.lt.s32.totalorder %s440, 3
        %s442 = scalar_select %p441, %s440, 3
        %s443 = smul.addr %s442, 4
        %s444 = scalar_lea.vmem %s4, %s443
        %s445 = sld [smem:[#allocation4 + %s39]]
        %s446 = sld [smem:[#allocation4 + %s39]]
        %s447 = sld [smem:[#allocation4 + %s39]]
        %p448 = scmp.lt.s32.totalorder %s447, 3
        %s449 = scalar_select %p448, %s447, 3
        %s450 = smul.addr %s449, 4
        %s451 = scalar_lea.vmem %s6, %s450
        %s452 = sld [smem:[#allocation4 + %s39]]
        %p453 = scmp.lt.s32.totalorder %s39, 5
        %s454 = scalar_select %p453, %s39, 5
        %s455 = scalar_lea.vmem %s8, %s454
        %s457 = sld [smem:[#allocation5 + %s39]]
        %p458 = scmp.eq.s32.totalorder %s457, 0
        // Predicated region
        $region61: #{_hyper_forward.1} parent=47 // pred_check
          %p459 = pneg %p458
        $region62: #{_hyper_forward.1} parent=47 // pred_check_branch
          %461 = sbr.rel (%p459) target = $region64
        $region63: #{_hyper_forward.1} parent=47 // pred_region
          %v462 = vld [vmem:[%s2] sm:$0xff]
          %v463 = vld [vmem:[%s367] sm:$0xf]
          %v464 = vld [vmem:[%s367 + $0x4] sm:$0xf]
          %v465 = vld [vmem:[%s367 + $0x8] sm:$0xf]
          %v466 = vld [vmem:[%s367 + $0xc] sm:$0xf]
          %v467 = vld [vmem:[%s444] sm:$0x7]
          %v468 = vpack.c.bf16 %v462, %v462
          %v469 = vlaneseq
          %v470 = vshrl.u32 %v469, 7
          %v471 = vsub.s32 0, %v470
          %v472 = vrot.slane %v467, %v471
          %v477 = vunpack.c.l.b16 %v463
          %v478 = vunpack.c.l.b16 %v464
          %v479 = vunpack.c.l.b16 %v465
          %v480 = vunpack.c.l.b16 %v466
          %v481 = vpack.c.b16 %v478, %v477
          %v482 = vpack.c.b16 %v480, %v479
          %vm485 = vcmask 261120
          %v487 = vsel %vm485, %v468, 0
          %489 = vmatprep.subr.bf16.mxu0 0
          %490 = vmatpush1.bf16.msra.mxu0 0
          %491 = vmatprep.subr.bf16.mxu0 0
          %492 = vmatpush1.bf16.msra.mxu0 0
          %493 = vmatprep.subr.bf16.mxu0 0
          %494 = vmatpush1.bf16.msra.mxu0 0
          %495 = vmatprep.subr.bf16.mxu0 0
          %496 = vmatpush1.bf16.msra.mxu0 0
          %497 = vmatprep.subr.bf16.mxu0 0
          %498 = vmatpush1.bf16.msra.mxu0 0
          %499 = vmatprep.subr.bf16.mxu0 0
          %500 = vmatpush1.bf16.msra.mxu0 0
          %501 = vmatprep.subr.bf16.mxu0 0
          %502 = vmatpush1.bf16.msra.mxu0 %v482
          %503 = vmatprep.subr.bf16.mxu0 0
          %504 = vmatpush1.bf16.msra.mxu0 %v481
          %505 = vmatprep.subr.bf16.mxu0 0
          %506 = vmatpush2.bf16.msra.mxu0 0
          %507 = vmatprep.subr.bf16.mxu0 0
          %508 = vmatpush2.bf16.msra.mxu0 0
          %509 = vmatprep.subr.bf16.mxu0 0
          %510 = vmatpush2.bf16.msra.mxu0 0
          %511 = vmatprep.subr.bf16.mxu0 0
          %512 = vmatpush2.bf16.msra.mxu0 0
          %513 = vmatprep.subr.bf16.mxu0 0
          %514 = vmatpush2.bf16.msra.mxu0 0
          %515 = vmatprep.subr.bf16.mxu0 0
          %516 = vmatpush2.bf16.msra.mxu0 0
          %517 = vmatprep.subr.bf16.mxu0 0
          %518 = vmatpush2.bf16.msra.mxu0 0
          %519 = vmatprep.subr.bf16.mxu0 0
          %520 = vmatpush2.bf16.msra.mxu0 0
          %521 = vmatprep.mubr.bf16.mxu0 0
          %522 = vmatmul.mubr.bf16.gmra.mxu0 %v487
          %v523 = vpop.f32.mrf.mxu0
          %v524 = vadd.f32 %v472, %v523
          %v525 = vpop.f32.mrf.mxu0
          %v526 = vpop.f32.mrf.mxu0
          %v527 = vpop.f32.mrf.mxu0
          %528 = vdwg.mxu0
          %v529 = vsel %vm485, %v524, 0.0
          %530 = vadd.xlane.f32.xlu0 %v529
          %v531 = vpop.xlane.xlu0 %530
          %v532 = vrcp.pop 32.0
          %v533 = vmul.f32 %v531, %v532
          %v534 = vmul.f32 %v524, %v524
          %v535 = vsel %vm485, %v534, 0.0
          %536 = vadd.xlane.f32.xlu0 %v535
          %v537 = vpop.xlane.xlu0 %536
          %v538 = vmul.f32 %v537, %v532
          %v539 = vmul.f32 %v533, %v533
          %v540 = vsub.f32 %v538, %v539
          %v541 = vmax.f32 %v540, 0.0
          %v542 = vsub.f32 %v524, %v533
          %v543 = vadd.f32 %v541, 1e-05
          %v544 = vrsqrt.pop %v543
          %v545 = vmul.f32 %v542, %v544
          %v546 = vlaneseq
          %v547 = vshrl.u32 %v546, 7
          %v548 = vsub.s32 1, %v547
          %v549 = vrot.slane %v467, %v548
          %v550 = vmul.f32 %v545, %v549
          %v551 = vlaneseq
          %v552 = vshrl.u32 %v551, 7
          %v553 = vsub.s32 2, %v552
          %v554 = vrot.slane %v467, %v553
          %v555 = vadd.f32 %v550, %v554
          %v556 = vmax.f32 %v555, 0.0
          %v557 = vld [vmem:[%s376] sm:$0xf]
          %v558 = vld [vmem:[%s376 + $0x4] sm:$0xf]
          %v559 = vld [vmem:[%s376 + $0x8] sm:$0xf]
          %v560 = vld [vmem:[%s376 + $0xc] sm:$0xf]
          %v561 = vld [vmem:[%s451] sm:$0x7]
          %v562 = vpack.c.bf16 %v556, %v556
          %v563 = vlaneseq
          %v564 = vshrl.u32 %v563, 7
          %v565 = vsub.s32 0, %v564
          %v566 = vrot.slane %v561, %v565
          %v571 = vunpack.c.l.b16 %v557
          %v572 = vunpack.c.l.b16 %v558
          %v573 = vunpack.c.l.b16 %v559
          %v574 = vunpack.c.l.b16 %v560
          %v575 = vpack.c.b16 %v572, %v571
          %v576 = vpack.c.b16 %v574, %v573
          %v580 = vsel %vm485, %v562, 0
          %582 = vmatprep.subr.bf16.mxu0 0
          %583 = vmatpush1.bf16.msra.mxu0 0
          %584 = vmatprep.subr.bf16.mxu0 0
          %585 = vmatpush1.bf16.msra.mxu0 0
          %586 = vmatprep.subr.bf16.mxu0 0
          %587 = vmatpush1.bf16.msra.mxu0 0
          %588 = vmatprep.subr.bf16.mxu0 0
          %589 = vmatpush1.bf16.msra.mxu0 0
          %590 = vmatprep.subr.bf16.mxu0 0
          %591 = vmatpush1.bf16.msra.mxu0 0
          %592 = vmatprep.subr.bf16.mxu0 0
          %593 = vmatpush1.bf16.msra.mxu0 0
          %594 = vmatprep.subr.bf16.mxu0 0
          %595 = vmatpush1.bf16.msra.mxu0 %v576
          %596 = vmatprep.subr.bf16.mxu0 0
          %597 = vmatpush1.bf16.msra.mxu0 %v575
          %598 = vmatprep.subr.bf16.mxu0 0
          %599 = vmatpush2.bf16.msra.mxu0 0
          %600 = vmatprep.subr.bf16.mxu0 0
          %601 = vmatpush2.bf16.msra.mxu0 0
          %602 = vmatprep.subr.bf16.mxu0 0
          %603 = vmatpush2.bf16.msra.mxu0 0
          %604 = vmatprep.subr.bf16.mxu0 0
          %605 = vmatpush2.bf16.msra.mxu0 0
          %606 = vmatprep.subr.bf16.mxu0 0
          %607 = vmatpush2.bf16.msra.mxu0 0
          %608 = vmatprep.subr.bf16.mxu0 0
          %609 = vmatpush2.bf16.msra.mxu0 0
          %610 = vmatprep.subr.bf16.mxu0 0
          %611 = vmatpush2.bf16.msra.mxu0 0
          %612 = vmatprep.subr.bf16.mxu0 0
          %613 = vmatpush2.bf16.msra.mxu0 0
          %614 = vmatprep.mubr.bf16.mxu0 0
          %615 = vmatmul.mubr.bf16.gmra.mxu0 %v580
          %v616 = vpop.f32.mrf.mxu0
          %v617 = vadd.f32 %v566, %v616
          %v618 = vpop.f32.mrf.mxu0
          %v619 = vpop.f32.mrf.mxu0
          %v620 = vpop.f32.mrf.mxu0
          %621 = vdwg.mxu0
          %v622 = vsel %vm485, %v617, 0.0
          %623 = vadd.xlane.f32.xlu0 %v622
          %v624 = vpop.xlane.xlu0 %623
          %v625 = vmul.f32 %v624, %v532
          %v626 = vmul.f32 %v617, %v617
          %v627 = vsel %vm485, %v626, 0.0
          %628 = vadd.xlane.f32.xlu0 %v627
          %v629 = vpop.xlane.xlu0 %628
          %v630 = vmul.f32 %v629, %v532
          %v631 = vmul.f32 %v625, %v625
          %v632 = vsub.f32 %v630, %v631
          %v633 = vmax.f32 %v632, 0.0
          %v634 = vsub.f32 %v617, %v625
          %v635 = vadd.f32 %v633, 1e-05
          %v636 = vrsqrt.pop %v635
          %v637 = vmul.f32 %v634, %v636
          %v638 = vlaneseq
          %v639 = vshrl.u32 %v638, 7
          %v640 = vsub.s32 1, %v639
          %v641 = vrot.slane %v561, %v640
          %v642 = vmul.f32 %v637, %v641
          %v643 = vlaneseq
          %v644 = vshrl.u32 %v643, 7
          %v645 = vsub.s32 2, %v644
          %v646 = vrot.slane %v561, %v645
          %v647 = vadd.f32 %v642, %v646
          %v648 = vmax.f32 %v647, 0.0
          %649 = vst.msk [vmem:[#allocation2] sm:$0xff] %vm485, %v648
        $region64: #{_hyper_forward.1} parent=47 // pred_fallthru
          _
        %v650 = vld [vmem:[#allocation2] sm:$0xff]
        %v651 = vpack.c.bf16 %v650, %v650
        %v652 = vld [vmem:[%s385] sm:$0xf]
        %v653 = vld [vmem:[%s385 + $0x4] sm:$0xf]
        %v654 = vld [vmem:[%s385 + $0x8] sm:$0xf]
        %v655 = vld [vmem:[%s385 + $0xc] sm:$0xf]
        %v656 = vld [vmem:[%s455] sm:$0x1]
        %v658 = vlaneseq
        %v659 = vshrl.u32 %v658, 7
        %v660 = vsub.s32 0, %v659
        %v661 = vrot.slane %v656, %v660
        %v667 = vunpack.c.l.b16 %v652
        %v668 = vunpack.c.l.b16 %v653
        %v669 = vunpack.c.l.b16 %v654
        %v670 = vunpack.c.l.b16 %v655
        %v671 = vpack.c.b16 %v668, %v667
        %v672 = vpack.c.b16 %v670, %v669
        %vm675 = vcmask 261120
        %v677 = vsel %vm675, %v651, 0
        %679 = vmatprep.subr.bf16.mxu0 0
        %680 = vmatpush1.bf16.msra.mxu0 0
        %681 = vmatprep.subr.bf16.mxu0 0
        %682 = vmatpush1.bf16.msra.mxu0 0
        %683 = vmatprep.subr.bf16.mxu0 0
        %684 = vmatpush1.bf16.msra.mxu0 0
        %685 = vmatprep.subr.bf16.mxu0 0
        %686 = vmatpush1.bf16.msra.mxu0 0
        %687 = vmatprep.subr.bf16.mxu0 0
        %688 = vmatpush1.bf16.msra.mxu0 0
        %689 = vmatprep.subr.bf16.mxu0 0
        %690 = vmatpush1.bf16.msra.mxu0 0
        %691 = vmatprep.subr.bf16.mxu0 0
        %692 = vmatpush1.bf16.msra.mxu0 %v672
        %693 = vmatprep.subr.bf16.mxu0 0
        %694 = vmatpush1.bf16.msra.mxu0 %v671
        %695 = vmatprep.subr.bf16.mxu0 0
        %696 = vmatpush2.bf16.msra.mxu0 0
        %697 = vmatprep.subr.bf16.mxu0 0
        %698 = vmatpush2.bf16.msra.mxu0 0
        %699 = vmatprep.subr.bf16.mxu0 0
        %700 = vmatpush2.bf16.msra.mxu0 0
        %701 = vmatprep.subr.bf16.mxu0 0
        %702 = vmatpush2.bf16.msra.mxu0 0
        %703 = vmatprep.subr.bf16.mxu0 0
        %704 = vmatpush2.bf16.msra.mxu0 0
        %705 = vmatprep.subr.bf16.mxu0 0
        %706 = vmatpush2.bf16.msra.mxu0 0
        %707 = vmatprep.subr.bf16.mxu0 0
        %708 = vmatpush2.bf16.msra.mxu0 0
        %709 = vmatprep.subr.bf16.mxu0 0
        %710 = vmatpush2.bf16.msra.mxu0 0
        %711 = vmatprep.mubr.bf16.mxu0 0
        %712 = vmatmul.mubr.bf16.gmra.mxu0 %v677
        %v713 = vpop.f32.mrf.mxu0
        %v714 = vadd.f32 %v661, %v713
        %v715 = vpop.f32.mrf.mxu0
        %v716 = vpop.f32.mrf.mxu0
        %v717 = vpop.f32.mrf.mxu0
        %718 = vdwg.mxu0
        %719 = vst [vmem:[%s438] sm:$0xff] %v714
        %s720 = sand.u32 %s232, 1
        %s721 = scalar_lea.sflag [#allocation8], %s720
        %s722 = sand.u32 %s232, 1
        %s723 = smul.addr %s722, 8
        %s724 = scalar_lea.vmem [#allocation12], %s723
        // Predicated region
        $region65: #{_hyper_forward.1} parent=47 // pred_check
          %p725 = pneg %p242
        $region66: #{_hyper_forward.1} parent=47 // pred_check_branch
          %727 = sbr.rel (%p725) target = $region68
        $region67: #{_hyper_forward.1} parent=47 // pred_region
          %s729 = ssub.s32 128, 128
          %730 = vsyncadd %s721, %s729
          %s731 = smul.addr %s39, 128
          %s732 = scalar_lea.hbm %s9, %s731
          %s734 = sshll.u32 %s724, 4
          %s735 = int_to_ptr.vmem [resolvable:$true] %s734
          %737 = dma.vmem_to_hbm [thread:$0]  %s735, 128, %s732, %s721
        $region68: #{_hyper_forward.1} parent=47 // pred_fallthru
          _
      $region48: #{_hyper_forward.1} parent=5 // pred_fallthru
        _
      %p738 = scmp.le.s32.totalorder 2, %s34
      // Predicated region
      $region69: #{_hyper_forward.1} parent=5 // pred_check
        %p739 = pneg %p738
      $region70: #{_hyper_forward.1} parent=5 // pred_check_branch
        %741 = sbr.rel (%p739) target = $region72
      $region71: #{_hyper_forward.1} parent=5 // pred_region
        %s742 = ssub.s32 %s34, 2
        // Predicated region
        $region73: #{_hyper_forward.1} parent=71 // pred_check
          %p743 = pneg %p248
        $region74: #{_hyper_forward.1} parent=71 // pred_check_branch
          %745 = sbr.rel (%p743) target = $region76
        $region75: #{_hyper_forward.1} parent=71 // pred_region
          %s746 = sand.u32 %s233, 1
          %s747 = scalar_lea.sflag [#allocation8], %s746
          %s748 = sand.u32 %s233, 1
          %s749 = smul.addr %s748, 8
          %s750 = scalar_lea.vmem [#allocation12], %s749
          %751 = dma.done %s747, 128
        $region76: #{_hyper_forward.1} parent=71 // pred_fallthru
          _
      $region72: #{_hyper_forward.1} parent=5 // pred_fallthru
        _
    $region6: #{_hyper_forward.1} parent=1 // loop_footer
      %s38 = sadd.s32 1, %s34
    $region7: #{_hyper_forward.1} parent=1 // loop_footer_branch
      %33 = sbr.rel target = $region3
    $region8: #{_hyper_forward.1} parent=1 // loop_exit
      _
    %752 = vsyncpa [#allocation7], 1
    %s753 = scalar_lea.sflag [#allocation7], 1
    %754 = vsyncpa %s753, 1
    %755 = vsyncpa [#allocation10], 1
    %s756 = scalar_lea.sflag [#allocation10], 1
    %757 = vsyncpa %s756, 1
    %758 = vsyncpa [#allocation8], 1
    %s759 = scalar_lea.sflag [#allocation8], 1
    %760 = vsyncpa %s759, 1

</llo_original>
